<compile_context>
chip_gen: v7x
topology: tpu7x:2x2x1
jax: 0.10.0
libtpu: 0.0.40
codegen_flags: <defaults>
</compile_context>

<pallas_src>
import functools

import jax
import jax.numpy as jnp
from jax.experimental import pallas as pl
from jax.experimental.pallas import tpu as pltpu


def _gelu_new(x):
    # GPT-Neo "gelu_new" (tanh approximation), computed in f32.
    # tanh lowers to the EUP slot, off the MXU critical path.
    c = jnp.sqrt(2.0 / jnp.pi).astype(jnp.float32)
    return 0.5 * x * (1.0 + jnp.tanh(c * (x + 0.044715 * (x * x * x))))


def _mlp_kernel(x_ref, wfc_ref, bfc_ref, wproj_ref, bproj_ref, o_ref, acc_ref):
    # x_ref:     (tm, H)
    # wfc_ref:   (H, tf)    bfc_ref:   (1, tf)
    # wproj_ref: (tf, H)    bproj_ref: (1, H)
    # o_ref:     (tm, H)    acc_ref:   (tm, H) f32 scratch
    k = pl.program_id(1)

    @pl.when(k == 0)
    def _():
        acc_ref[...] = jnp.zeros_like(acc_ref)

    # First matmul: (tm, H) @ (H, tf) on the MXU, f32 accumulation.
    # No operand upcasts -- native dtypes go straight to the MXU.
    h = jnp.dot(x_ref[...], wfc_ref[...], preferred_element_type=jnp.float32)
    h = h + bfc_ref[...].astype(jnp.float32)

    a = _gelu_new(h)

    # Partial second matmul: (tm, tf) @ (tf, H), accumulated across k in f32.
    acc_ref[...] += jnp.dot(a.astype(wproj_ref.dtype), wproj_ref[...],
                            preferred_element_type=jnp.float32)

    @pl.when(k == pl.num_programs(1) - 1)
    def _():
        y = acc_ref[...] + bproj_ref[...].astype(jnp.float32)
        # TODO(synk): resid dropout is eval-mode identity; training-mode
        # dropout would use pltpu.prng_seed + pltpu.prng_random_bits here.
        o_ref[...] = y.astype(o_ref.dtype)


def _round_up(x, m):
    return (x + m - 1) // m * m


@functools.partial(jax.jit, static_argnames=("tm", "tf"))
def gpt_neo_mlp(hidden_states, w_fc, b_fc, w_proj, b_proj, *, tm=256, tf=2048):
    """hidden_states: [B, S, H]; w_fc: [H, F]; b_fc: [F]; w_proj: [F, H]; b_proj: [H]."""
    B, S, H = hidden_states.shape
    F = w_fc.shape[1]
    M = B * S

    # Effective tiles: shrink for small problems, pad the token axis otherwise
    # (no divisibility assert -- padded rows are computed and sliced off).
    tm_eff = min(tm, _round_up(M, 8))
    tf_eff = min(tf, F)
    if F % tf_eff != 0:
        tf_eff = F  # fall back to a single F tile rather than mis-tiling

    M_pad = _round_up(M, tm_eff)
    x2d = hidden_states.reshape(M, H)
    if M_pad != M:
        x2d = jnp.pad(x2d, ((0, M_pad - M), (0, 0)))

    grid = (M_pad // tm_eff, F // tf_eff)

    # Advisory cost for XLA's scheduler around the custom call.
    cost = pl.CostEstimate(
        flops=4 * M_pad * H * F,                 # two matmuls, 2*M*H*F each
        transcendentals=M_pad * F,               # tanh in gelu_new
        bytes_accessed=(2 * M_pad * H) * x2d.dtype.itemsize
        + (H * F + F) * w_fc.dtype.itemsize
        + (F * H + H) * w_proj.dtype.itemsize,
    )

    out2d = pl.pallas_call(
        _mlp_kernel,
        out_shape=jax.ShapeDtypeStruct((M_pad, H), hidden_states.dtype),
        grid_spec=pltpu.PrefetchScalarGridSpec(
            num_scalar_prefetch=0,
            grid=grid,
            in_specs=[
                pl.BlockSpec((tm_eff, H), lambda i, k: (i, 0)),   # x tile
                pl.BlockSpec((H, tf_eff), lambda i, k: (0, k)),   # W_fc F-slab
                pl.BlockSpec((1, tf_eff), lambda i, k: (0, k)),   # b_fc F-slab
                pl.BlockSpec((tf_eff, H), lambda i, k: (k, 0)),   # W_proj F-slab
                pl.BlockSpec((1, H), lambda i, k: (0, 0)),        # b_proj
            ],
            out_specs=pl.BlockSpec((tm_eff, H), lambda i, k: (i, 0)),
            scratch_shapes=[pltpu.VMEM((tm_eff, H), jnp.float32)],
        ),
        compiler_params=pltpu.CompilerParams(
            dimension_semantics=("parallel", "arbitrary"),
            vmem_limit_bytes=64 << 20,
        ),
        cost_estimate=cost,
    )(x2d, w_fc, b_fc.reshape(1, F), w_proj, b_proj.reshape(1, H))

    if M_pad != M:
        out2d = out2d[:M]
    return out2d.reshape(B, S, H)


def _reference(hidden_states, w_fc, b_fc, w_proj, b_proj):
    x = hidden_states.astype(jnp.float32)
    h = x @ w_fc.astype(jnp.float32) + b_fc.astype(jnp.float32)
    a = _gelu_new(h)
    y = a @ w_proj.astype(jnp.float32) + b_proj.astype(jnp.float32)
    return y.astype(hidden_states.dtype)


if __name__ == "__main__":
    # Small config: hidden_size=32, intermediate_size=128, batch=2, seq=8.
    B, S, H, F = 2, 8, 32, 128

    key = jax.random.PRNGKey(0)
    k_x, k_wfc, k_bfc, k_wproj, k_bproj = jax.random.split(key, 5)

    x = jax.random.normal(k_x, (B, S, H), dtype=jnp.float32)
    # Deterministic synthetic params (nn.Linear weights stored as [in, out]).
    w_fc = 0.02 * jax.random.normal(k_wfc, (H, F), dtype=jnp.float32)
    b_fc = 0.02 * jax.random.normal(k_bfc, (F,), dtype=jnp.float32)
    w_proj = 0.02 * jax.random.normal(k_wproj, (F, H), dtype=jnp.float32)
    b_proj = 0.02 * jax.random.normal(k_bproj, (H,), dtype=jnp.float32)

    y = gpt_neo_mlp(x, w_fc, b_fc, w_proj, b_proj)
    jax.block_until_ready(y)

    y_ref = _reference(x, w_fc, b_fc, w_proj, b_proj)
    assert jnp.allclose(y, y_ref, atol=1e-4, rtol=1e-4), "mismatch vs reference"

    print("KERNEL_OK")
</pallas_src>

<mosaic_0001>
module attributes {stable_mosaic.version = 11 : i64} {
  func.func @_mlp_kernel(%arg0: i32, %arg1: i32, %arg2: memref<16x32xf32, #tpu.memory_space<vmem>>, %arg3: memref<32x128xf32, #tpu.memory_space<vmem>>, %arg4: memref<1x128xf32, #tpu.memory_space<vmem>>, %arg5: memref<128x32xf32, #tpu.memory_space<vmem>>, %arg6: memref<1x32xf32, #tpu.memory_space<vmem>>, %arg7: memref<16x32xf32, #tpu.memory_space<vmem>>, %arg8: memref<16x32xf32, #tpu.memory_space<vmem>>) attributes {dimension_semantics = [#tpu.dimension_semantics<parallel>, #tpu.dimension_semantics<arbitrary>], iteration_bounds = array<i64: 1, 1>, scalar_prefetch = 0 : i64, scratch_operands = 1 : i64, tpu.core_type = #tpu.core_type<tc>, window_params = [{transform_indices = @transform_0, window_bounds = array<i64: 16, 32>}, {transform_indices = @transform_1, window_bounds = array<i64: 32, 128>}, {transform_indices = @transform_2, window_bounds = array<i64: 1, 128>}, {transform_indices = @transform_3, window_bounds = array<i64: 128, 32>}, {pipeline_mode = #tpu.pipeline_mode<synchronous>, transform_indices = @transform_4, window_bounds = array<i64: 1, 32>}, {transform_indices = @transform_5, window_bounds = array<i64: 16, 32>}]} {
    %c0_i32 = arith.constant 0 : i32
    %0 = arith.cmpi eq, %arg1, %c0_i32 : i32
    %1 = arith.extui %0 : i1 to i32
    %c0_i32_0 = arith.constant 0 : i32
    %2 = arith.cmpi ne, %1, %c0_i32_0 : i32
    scf.if %2 {
      %cst_19 = arith.constant 0.000000e+00 : f32
      %31 = vector.broadcast %cst_19 : f32 to vector<16x32xf32>
      %c0_20 = arith.constant 0 : index
      %c0_21 = arith.constant 0 : index
      %32 = vector.load %arg8[%c0_20, %c0_21] : memref<16x32xf32, #tpu.memory_space<vmem>>, vector<16x32xf32>
      tpu.vector_store %arg8[%c0_20, %c0_21], %31 {strides = array<i32>} : memref<16x32xf32, #tpu.memory_space<vmem>>, vector<16x32xf32>,
    } else {
    }
    %c0 = arith.constant 0 : index
    %c0_1 = arith.constant 0 : index
    %3 = vector.load %arg2[%c0, %c0_1] : memref<16x32xf32, #tpu.memory_space<vmem>>, vector<16x32xf32>
    %c0_2 = arith.constant 0 : index
    %c0_3 = arith.constant 0 : index
    %4 = vector.load %arg3[%c0_2, %c0_3] : memref<32x128xf32, #tpu.memory_space<vmem>>, vector<32x128xf32>
    %cst = arith.constant dense<0.000000e+00> : vector<16x128xf32>
    %5 = tpu.matmul %3, %4, %cst {dimension_numbers = #tpu.dot_dimension_numbers<[1], [0], [0], [1], [0, 0, 1, 1], [], []>} : vector<16x32xf32>, vector<32x128xf32>, vector<16x128xf32> -> vector<16x128xf32>
    %c0_4 = arith.constant 0 : index
    %c0_5 = arith.constant 0 : index
    %6 = vector.load %arg4[%c0_4, %c0_5] : memref<1x128xf32, #tpu.memory_space<vmem>>, vector<1x128xf32>
    %7 = vector.broadcast %6 : vector<1x128xf32> to vector<16x128xf32>
    %8 = arith.addf %5, %7 : vector<16x128xf32>
    %cst_6 = arith.constant 0.636619746 : f32
    %9 = math.sqrt %cst_6 : f32
    %cst_7 = arith.constant 5.000000e-01 : f32
    %10 = vector.broadcast %cst_7 : f32 to vector<16x128xf32>
    %11 = arith.mulf %10, %8 : vector<16x128xf32>
    %12 = arith.mulf %8, %8 : vector<16x128xf32>
    %13 = arith.mulf %12, %8 : vector<16x128xf32>
    %cst_8 = arith.constant 4.471500e-02 : f32
    %14 = vector.broadcast %cst_8 : f32 to vector<16x128xf32>
    %15 = arith.mulf %14, %13 : vector<16x128xf32>
    %16 = arith.addf %8, %15 : vector<16x128xf32>
    %17 = vector.broadcast %9 : f32 to vector<16x128xf32>
    %18 = arith.mulf %17, %16 : vector<16x128xf32>
    %19 = math.tanh %18 : vector<16x128xf32>
    %cst_9 = arith.constant 1.000000e+00 : f32
    %20 = vector.broadcast %cst_9 : f32 to vector<16x128xf32>
    %21 = arith.addf %20, %19 : vector<16x128xf32>
    %22 = arith.mulf %11, %21 : vector<16x128xf32>
    %c0_10 = arith.constant 0 : index
    %c0_11 = arith.constant 0 : index
    %23 = vector.load %arg8[%c0_10, %c0_11] : memref<16x32xf32, #tpu.memory_space<vmem>>, vector<16x32xf32>
    %c0_12 = arith.constant 0 : index
    %c0_13 = arith.constant 0 : index
    %24 = vector.load %arg5[%c0_12, %c0_13] : memref<128x32xf32, #tpu.memory_space<vmem>>, vector<128x32xf32>
    %cst_14 = arith.constant dense<0.000000e+00> : vector<16x32xf32>
    %25 = tpu.matmul %22, %24, %cst_14 {dimension_numbers = #tpu.dot_dimension_numbers<[1], [0], [0], [1], [0, 0, 1, 1], [], []>} : vector<16x128xf32>, vector<128x32xf32>, vector<16x32xf32> -> vector<16x32xf32>
    %26 = arith.addf %23, %25 : vector<16x32xf32>
    %c0_15 = arith.constant 0 : index
    %c0_16 = arith.constant 0 : index
    %27 = vector.load %arg8[%c0_15, %c0_16] : memref<16x32xf32, #tpu.memory_space<vmem>>, vector<16x32xf32>
    tpu.vector_store %arg8[%c0_15, %c0_16], %26 {strides = array<i32>} : memref<16x32xf32, #tpu.memory_space<vmem>>, vector<16x32xf32>,
    %c0_i32_17 = arith.constant 0 : i32
    %28 = arith.cmpi eq, %arg1, %c0_i32_17 : i32
    %29 = arith.extui %28 : i1 to i32
    %c0_i32_18 = arith.constant 0 : i32
    %30 = arith.cmpi ne, %29, %c0_i32_18 : i32
    scf.if %30 {
      %c0_19 = arith.constant 0 : index
      %c0_20 = arith.constant 0 : index
      %31 = vector.load %arg8[%c0_19, %c0_20] : memref<16x32xf32, #tpu.memory_space<vmem>>, vector<16x32xf32>
      %c0_21 = arith.constant 0 : index
      %c0_22 = arith.constant 0 : index
      %32 = vector.load %arg6[%c0_21, %c0_22] : memref<1x32xf32, #tpu.memory_space<vmem>>, vector<1x32xf32>
      %33 = vector.broadcast %32 : vector<1x32xf32> to vector<16x32xf32>
      %34 = arith.addf %31, %33 : vector<16x32xf32>
      %c0_23 = arith.constant 0 : index
      %c0_24 = arith.constant 0 : index
      %35 = vector.load %arg7[%c0_23, %c0_24] : memref<16x32xf32, #tpu.memory_space<vmem>>, vector<16x32xf32>
      tpu.vector_store %arg7[%c0_23, %c0_24], %34 {strides = array<i32>} : memref<16x32xf32, #tpu.memory_space<vmem>>, vector<16x32xf32>,
    } else {
    }
    return
  }
  func.func @transform_0(%arg0: i32, %arg1: i32) -> (i32, i32) {
    %c0_i32 = arith.constant 0 : i32
    %c0_i32_0 = arith.constant 0 : i32
    return %arg0, %c0_i32 : i32, i32
  }
  func.func @transform_1(%arg0: i32, %arg1: i32) -> (i32, i32) {
    %c0_i32 = arith.constant 0 : i32
    %c0_i32_0 = arith.constant 0 : i32
    return %c0_i32, %arg1 : i32, i32
  }
  func.func @transform_2(%arg0: i32, %arg1: i32) -> (i32, i32) {
    %c0_i32 = arith.constant 0 : i32
    %c0_i32_0 = arith.constant 0 : i32
    return %c0_i32, %arg1 : i32, i32
  }
  func.func @transform_3(%arg0: i32, %arg1: i32) -> (i32, i32) {
    %c0_i32 = arith.constant 0 : i32
    %c0_i32_0 = arith.constant 0 : i32
    return %arg1, %c0_i32 : i32, i32
  }
  func.func @transform_4(%arg0: i32, %arg1: i32) -> (i32, i32) {
    %c0_i32 = arith.constant 0 : i32
    %c0_i32_0 = arith.constant 0 : i32
    %c0_i32_1 = arith.constant 0 : i32
    return %c0_i32, %c0_i32_0 : i32, i32
  }
  func.func @transform_5(%arg0: i32, %arg1: i32) -> (i32, i32) {
    %c0_i32 = arith.constant 0 : i32
    %c0_i32_0 = arith.constant 0 : i32
    return %arg0, %c0_i32 : i32, i32
  }
}

</mosaic_0001>

<llo_original>
// kernel: gpt_neo_mlp.1
$region0: #{gpt_neo_mlp.1}
  #allocation0 [shape = 'u32[]', space=smem, size = 0x4, offset = 0x4, fixed_abs, tag = 'smem constant byte address 0x4 - core index']
  #allocation1 [shape = 'u32[144,128]{1,0:T(1,128)}', space=vmem, size = 0x12000, scoped, tag = 'internal scratch']
  #allocation2 [shape = 'f32[16,32]{1,0:T(8,128)}', space=vmem, size = 0x2000, scoped, tag = 'scratch operand']
  %s0 = inlined_call_operand.hbm [shape: f32[16,32], index: 0, kind: input, shape index: {}]
  %s1 = inlined_call_operand.hbm [shape: f32[32,128], index: 1, kind: input, shape index: {}]
  %s2 = inlined_call_operand.hbm [shape: f32[1,128], index: 2, kind: input, shape index: {}]
  %s3 = inlined_call_operand.hbm [shape: f32[128,32], index: 3, kind: input, shape index: {}]
  %s4 = inlined_call_operand.hbm [shape: f32[1,32], index: 4, kind: input, shape index: {}]
  %s5 = inlined_call_operand.hbm [shape: f32[16,32], index: 5, kind: output, shape index: {}]
  %s6 = sld [smem:[#allocation0]]
  $region58: #{gpt_neo_mlp.1} parent=0
    _
  %s8 = ssub.s32 1, %s6
  %s9 = scalar_select 0, %s8, %s6
  $region1: #{gpt_neo_mlp.1} parent=0
    #allocation3 [shape = 'u8[8192]{0}', space=vmem, size = 0x2000, scoped, tag = 'input window, operand 0, single buffered']
    #allocation4 [shape = 's32[1]{0}', space=sflag, size = 0x4, scoped, tag = 'scoped memory for gpt_neo_mlp.1']
    #allocation5 [shape = 's32[1]{0}', space=sflag, size = 0x4, scoped, tag = 'scoped memory for gpt_neo_mlp.1']
    #allocation6 [shape = 'u8[16384]{0}', space=vmem, size = 0x4000, scoped, tag = 'input window, operand 1, single buffered']
    #allocation7 [shape = 's32[1]{0}', space=sflag, size = 0x4, scoped, tag = 'scoped memory for gpt_neo_mlp.1']
    #allocation8 [shape = 'u8[512]{0}', space=vmem, size = 0x400, scoped, tag = 'input window, operand 2, single buffered']
    #allocation9 [shape = 'u8[65536]{0}', space=vmem, size = 0x10000, scoped, tag = 'input window, operand 3, single buffered']
    #allocation10 [shape = 's32[1]{0}', space=sflag, size = 0x4, scoped, tag = 'scoped memory for gpt_neo_mlp.1']
    #allocation11 [shape = 'u8[512]{0}', space=vmem, size = 0x400, scoped, tag = 'input window, operand 4, single buffered']
    #allocation12 [shape = 'u8[8192]{0}', space=vmem, size = 0x2000, scoped, tag = 'output window, operand 0, single buffered']
    %10 = vsyncpa [#allocation4], 0
    %11 = vsyncpa [#allocation7], 0
    %12 = vsyncpa [#allocation10], 0
    %13 = vsyncpa [#allocation5], 0
    // Predicated region
    $region2: #{gpt_neo_mlp.1} parent=1 // pred_check
      _
    $region3: #{gpt_neo_mlp.1} parent=1 // pred_check_branch
      %15 = sbr.rel (0) target = $region5
    $region4: #{gpt_neo_mlp.1} parent=1 // pred_region
      %s17 = ssub.s32 256, 256
      %18 = vsyncadd [#allocation4], %s17
      %s19 = sshll.u32 [#allocation3], 4
      %s20 = int_to_ptr.vmem [resolvable:$true] %s19
      %25 = dma.hbm_to_vmem [thread:$0]  %s0, 256, %s20, [#allocation4], 128, 128, 8
    $region5: #{gpt_neo_mlp.1} parent=1 // pred_fallthru
      _
    // Predicated region
    $region6: #{gpt_neo_mlp.1} parent=1 // pred_check
      _
    $region7: #{gpt_neo_mlp.1} parent=1 // pred_check_branch
      %27 = sbr.rel (0) target = $region9
    $region8: #{gpt_neo_mlp.1} parent=1 // pred_region
      %s29 = ssub.s32 512, 512
      %30 = vsyncadd [#allocation7], %s29
      %s31 = sshll.u32 [#allocation6], 4
      %s32 = int_to_ptr.vmem [resolvable:$true] %s31
      %37 = dma.hbm_to_vmem [thread:$0]  %s1, 512, %s32, [#allocation7], 128, 128, 8
    $region9: #{gpt_neo_mlp.1} parent=1 // pred_fallthru
      _
    // Predicated region
    $region10: #{gpt_neo_mlp.1} parent=1 // pred_check
      _
    $region11: #{gpt_neo_mlp.1} parent=1 // pred_check_branch
      %39 = sbr.rel (0) target = $region13
    $region12: #{gpt_neo_mlp.1} parent=1 // pred_region
      %s41 = ssub.s32 16, 16
      %42 = vsyncadd [#allocation7], %s41
      %s44 = sshll.u32 [#allocation8], 4
      %s45 = int_to_ptr.vmem [resolvable:$true] %s44
      %47 = dma.hbm_to_vmem [thread:$0]  %s2, 16, %s45, [#allocation7]
    $region13: #{gpt_neo_mlp.1} parent=1 // pred_fallthru
      _
    // Predicated region
    $region14: #{gpt_neo_mlp.1} parent=1 // pred_check
      _
    $region15: #{gpt_neo_mlp.1} parent=1 // pred_check_branch
      %49 = sbr.rel (0) target = $region17
    $region16: #{gpt_neo_mlp.1} parent=1 // pred_region
      %s51 = ssub.s32 2048, 2048
      %52 = vsyncadd [#allocation10], %s51
      %s53 = sshll.u32 [#allocation9], 4
      %s54 = int_to_ptr.vmem [resolvable:$true] %s53
      %59 = dma.hbm_to_vmem [thread:$0]  %s3, 2048, %s54, [#allocation10], 128, 128, 8
    $region17: #{gpt_neo_mlp.1} parent=1 // pred_fallthru
      _
    // Predicated region
    $region18: #{gpt_neo_mlp.1} parent=1 // pred_check
      _
    $region19: #{gpt_neo_mlp.1} parent=1 // pred_check_branch
      %61 = sbr.rel (0) target = $region21
    $region20: #{gpt_neo_mlp.1} parent=1 // pred_region
      %s63 = ssub.s32 16, 16
      %64 = vsyncadd [#allocation10], %s63
      %s66 = sshll.u32 [#allocation11], 4
      %s67 = int_to_ptr.vmem [resolvable:$true] %s66
      %69 = dma.hbm_to_vmem [thread:$0]  %s4, 16, %s67, [#allocation10]
    $region21: #{gpt_neo_mlp.1} parent=1 // pred_fallthru
      _
    // Predicated region
    $region22: #{gpt_neo_mlp.1} parent=1 // pred_check
      _
    $region23: #{gpt_neo_mlp.1} parent=1 // pred_check_branch
      %71 = sbr.rel (0) target = $region25
    $region24: #{gpt_neo_mlp.1} parent=1 // pred_region
      %72 = dma.done [#allocation4], 256
    $region25: #{gpt_neo_mlp.1} parent=1 // pred_fallthru
      _
    // Predicated region
    $region26: #{gpt_neo_mlp.1} parent=1 // pred_check
      _
    $region27: #{gpt_neo_mlp.1} parent=1 // pred_check_branch
      %74 = sbr.rel (0) target = $region29
    $region28: #{gpt_neo_mlp.1} parent=1 // pred_region
      %75 = dma.done [#allocation7], 512
    $region29: #{gpt_neo_mlp.1} parent=1 // pred_fallthru
      _
    // Predicated region
    $region30: #{gpt_neo_mlp.1} parent=1 // pred_check
      _
    $region31: #{gpt_neo_mlp.1} parent=1 // pred_check_branch
      %77 = sbr.rel (0) target = $region33
    $region32: #{gpt_neo_mlp.1} parent=1 // pred_region
      %78 = dma.done [#allocation7], 16
    $region33: #{gpt_neo_mlp.1} parent=1 // pred_fallthru
      _
    // Predicated region
    $region34: #{gpt_neo_mlp.1} parent=1 // pred_check
      _
    $region35: #{gpt_neo_mlp.1} parent=1 // pred_check_branch
      %80 = sbr.rel (0) target = $region37
    $region36: #{gpt_neo_mlp.1} parent=1 // pred_region
      %81 = dma.done [#allocation10], 2048
    $region37: #{gpt_neo_mlp.1} parent=1 // pred_fallthru
      _
    // Predicated region
    $region38: #{gpt_neo_mlp.1} parent=1 // pred_check
      _
    $region39: #{gpt_neo_mlp.1} parent=1 // pred_check_branch
      %83 = sbr.rel (0) target = $region41
    $region40: #{gpt_neo_mlp.1} parent=1 // pred_region
      %84 = dma.done [#allocation10], 16
    $region41: #{gpt_neo_mlp.1} parent=1 // pred_fallthru
      _
    %p85 = scmp.eq.s32.totalorder 0, 0
    // Predicated region
    $region42: #{gpt_neo_mlp.1} parent=1 // pred_check
      %p86 = pneg %p85
    $region43: #{gpt_neo_mlp.1} parent=1 // pred_check_branch
      %88 = sbr.rel (%p86) target = $region45
    $region44: #{gpt_neo_mlp.1} parent=1 // pred_region
      %vm89 = vcmask 261120
      %90 = vst.msk [vmem:[#allocation2] sm:$0xff] %vm89, 0.0
      %91 = vst.msk [vmem:[#allocation2 + $0x8] sm:$0xff] %vm89, 0.0
    $region45: #{gpt_neo_mlp.1} parent=1 // pred_fallthru
      _
    %v92 = vld [vmem:[#allocation3] sm:$0xff]
    %v93 = vld [vmem:[#allocation3 + $0x8] sm:$0xff]
    %v94 = vld [vmem:[#allocation6] sm:$0xff]
    %v95 = vld [vmem:[#allocation6 + $0x8] sm:$0xff]
    %v96 = vld [vmem:[#allocation6 + $0x10] sm:$0xff]
    %v97 = vld [vmem:[#allocation6 + $0x18] sm:$0xff]
    %v98 = vld [vmem:[#allocation8] sm:$0x1]
    %v100 = vlaneseq
    %v101 = vshrl.u32 %v100, 7
    %v102 = vsub.s32 0, %v101
    %v103 = vrot.slane %v98, %v102
    %vm105 = vcmask 261120
    %v107 = vsel %vm105, %v92, 0
    %v110 = vsel %vm105, %v93, 0
    %112 = vmatprep.subr.mxu0 0.0
    %113 = vmatpush1.msra.mxu0 %v94
    %114 = vmatprep.subr.mxu0 0.0
    %115 = vmatpush1.msra.mxu0 %v95
    %116 = vmatprep.subr.mxu0 0.0
    %117 = vmatpush1.msra.mxu0 %v96
    %118 = vmatprep.subr.mxu0 0.0
    %119 = vmatpush1.msra.mxu0 %v97
    %120 = vmatprep.subr.mxu0 0.0
    %121 = vmatpush1.msra.mxu0 0.0
    %122 = vmatprep.subr.mxu0 0.0
    %123 = vmatpush1.msra.mxu0 0.0
    %124 = vmatprep.subr.mxu0 0.0
    %125 = vmatpush1.msra.mxu0 0.0
    %126 = vmatprep.subr.mxu0 0.0
    %127 = vmatpush1.msra.mxu0 0.0
    %128 = vmatprep.subr.mxu0 0.0
    %129 = vmatpush1.msra.mxu0 0.0
    %130 = vmatprep.subr.mxu0 0.0
    %131 = vmatpush1.msra.mxu0 0.0
    %132 = vmatprep.subr.mxu0 0.0
    %133 = vmatpush1.msra.mxu0 0.0
    %134 = vmatprep.subr.mxu0 0.0
    %135 = vmatpush1.msra.mxu0 0.0
    %136 = vmatprep.subr.mxu0 0.0
    %137 = vmatpush1.msra.mxu0 0.0
    %138 = vmatprep.subr.mxu0 0.0
    %139 = vmatpush1.msra.mxu0 0.0
    %140 = vmatprep.subr.mxu0 0.0
    %141 = vmatpush1.msra.mxu0 0.0
    %142 = vmatprep.subr.mxu0 0.0
    %143 = vmatpush1.msra.mxu0 0.0
    %144 = vmatprep.subr.mxu0 0.0
    %145 = vmatpush1.msra.mxu0 0.0
    %146 = vmatprep.subr.mxu0 0.0
    %147 = vmatpush1.msra.mxu0 0.0
    %148 = vmatprep.subr.mxu0 0.0
    %149 = vmatpush1.msra.mxu0 0.0
    %150 = vmatprep.subr.mxu0 0.0
    %151 = vmatpush1.msra.mxu0 0.0
    %152 = vmatprep.subr.mxu0 0.0
    %153 = vmatpush1.msra.mxu0 0.0
    %154 = vmatprep.subr.mxu0 0.0
    %155 = vmatpush1.msra.mxu0 0.0
    %156 = vmatprep.subr.mxu0 0.0
    %157 = vmatpush1.msra.mxu0 0.0
    %158 = vmatprep.subr.mxu0 0.0
    %159 = vmatpush1.msra.mxu0 0.0
    %160 = vmatprep.subr.mxu0 0.0
    %161 = vmatpush1.msra.mxu0 0.0
    %162 = vmatprep.subr.mxu0 0.0
    %163 = vmatpush1.msra.mxu0 0.0
    %164 = vmatprep.subr.mxu0 0.0
    %165 = vmatpush1.msra.mxu0 0.0
    %166 = vmatprep.subr.mxu0 0.0
    %167 = vmatpush1.msra.mxu0 0.0
    %168 = vmatprep.subr.mxu0 0.0
    %169 = vmatpush1.msra.mxu0 0.0
    %170 = vmatprep.subr.mxu0 0.0
    %171 = vmatpush1.msra.mxu0 0.0
    %172 = vmatprep.subr.mxu0 0.0
    %173 = vmatpush1.msra.mxu0 0.0
    %174 = vmatprep.subr.mxu0 0.0
    %175 = vmatpush1.msra.mxu0 0.0
    %176 = vmatprep.mubr.f32.mxu0 0.0
    %177 = vmatmul.mubr.f32.gmra.mrb[0].mxu0 %v107
    %v178 = vpop.f32.mrb[0].mxu0
    %v179 = vadd.f32 %v103, %v178
    %v180 = vpop.f32.mrb[0].mxu0
    %181 = vmatprep.mubr.f32.mxu0 0.0
    %182 = vmatmul.mubr.f32.gmra.mrb[0].mxu0 %v110
    %v183 = vpop.f32.mrb[0].mxu0
    %v184 = vadd.f32 %v103, %v183
    %v185 = vpop.f32.mrb[0].mxu0
    %186 = vdwg.mxu0
    %v187 = vmul.f32 %v179, 0.5
    %v188 = vmul.f32 %v184, 0.5
    %v189 = vmul.f32 %v179, %v179
    %v190 = vmul.f32 %v184, %v184
    %v191 = vmul.f32 %v189, %v179
    %v192 = vmul.f32 %v190, %v184
    %v193 = vmul.f32 %v191, 0.044715
    %v194 = vmul.f32 %v192, 0.044715
    %v195 = vadd.f32 %v179, %v193
    %v196 = vadd.f32 %v184, %v194
    %v197 = vmul.f32 %v195, 0.7978845
    %v198 = vmul.f32 %v196, 0.7978845
    %v199 = vtanh.pop %v197
    %v200 = vtanh.pop %v198
    %v201 = vadd.f32 %v199, 1.0
    %v202 = vadd.f32 %v200, 1.0
    %v203 = vmul.f32 %v187, %v201
    %v204 = vmul.f32 %v188, %v202
    %v205 = vld [vmem:[#allocation2] sm:$0xff]
    %v206 = vld [vmem:[#allocation2 + $0x8] sm:$0xff]
    %v207 = vld [vmem:[#allocation9] sm:$0xff]
    %v208 = vld [vmem:[#allocation9 + $0x8] sm:$0xff]
    %v209 = vld [vmem:[#allocation9 + $0x10] sm:$0xff]
    %v210 = vld [vmem:[#allocation9 + $0x18] sm:$0xff]
    %v211 = vld [vmem:[#allocation9 + $0x20] sm:$0xff]
    %v212 = vld [vmem:[#allocation9 + $0x28] sm:$0xff]
    %v213 = vld [vmem:[#allocation9 + $0x30] sm:$0xff]
    %v214 = vld [vmem:[#allocation9 + $0x38] sm:$0xff]
    %v215 = vld [vmem:[#allocation9 + $0x40] sm:$0xff]
    %v216 = vld [vmem:[#allocation9 + $0x48] sm:$0xff]
    %v217 = vld [vmem:[#allocation9 + $0x50] sm:$0xff]
    %v218 = vld [vmem:[#allocation9 + $0x58] sm:$0xff]
    %v219 = vld [vmem:[#allocation9 + $0x60] sm:$0xff]
    %v220 = vld [vmem:[#allocation9 + $0x68] sm:$0xff]
    %v221 = vld [vmem:[#allocation9 + $0x70] sm:$0xff]
    %v222 = vld [vmem:[#allocation9 + $0x78] sm:$0xff]
    %223 = vmatprep.subr.mxu0 0.0
    %224 = vmatpush1.msra.mxu0 %v207
    %225 = vmatprep.subr.mxu0 0.0
    %226 = vmatpush1.msra.mxu0 %v208
    %227 = vmatprep.subr.mxu0 0.0
    %228 = vmatpush1.msra.mxu0 %v209
    %229 = vmatprep.subr.mxu0 0.0
    %230 = vmatpush1.msra.mxu0 %v210
    %231 = vmatprep.subr.mxu0 0.0
    %232 = vmatpush1.msra.mxu0 %v211
    %233 = vmatprep.subr.mxu0 0.0
    %234 = vmatpush1.msra.mxu0 %v212
    %235 = vmatprep.subr.mxu0 0.0
    %236 = vmatpush1.msra.mxu0 %v213
    %237 = vmatprep.subr.mxu0 0.0
    %238 = vmatpush1.msra.mxu0 %v214
    %239 = vmatprep.subr.mxu0 0.0
    %240 = vmatpush1.msra.mxu0 %v215
    %241 = vmatprep.subr.mxu0 0.0
    %242 = vmatpush1.msra.mxu0 %v216
    %243 = vmatprep.subr.mxu0 0.0
    %244 = vmatpush1.msra.mxu0 %v217
    %245 = vmatprep.subr.mxu0 0.0
    %246 = vmatpush1.msra.mxu0 %v218
    %247 = vmatprep.subr.mxu0 0.0
    %248 = vmatpush1.msra.mxu0 %v219
    %249 = vmatprep.subr.mxu0 0.0
    %250 = vmatpush1.msra.mxu0 %v220
    %251 = vmatprep.subr.mxu0 0.0
    %252 = vmatpush1.msra.mxu0 %v221
    %253 = vmatprep.subr.mxu0 0.0
    %254 = vmatpush1.msra.mxu0 %v222
    %255 = vmatprep.subr.mxu0 0.0
    %256 = vmatpush1.msra.mxu0 0.0
    %257 = vmatprep.subr.mxu0 0.0
    %258 = vmatpush1.msra.mxu0 0.0
    %259 = vmatprep.subr.mxu0 0.0
    %260 = vmatpush1.msra.mxu0 0.0
    %261 = vmatprep.subr.mxu0 0.0
    %262 = vmatpush1.msra.mxu0 0.0
    %263 = vmatprep.subr.mxu0 0.0
    %264 = vmatpush1.msra.mxu0 0.0
    %265 = vmatprep.subr.mxu0 0.0
    %266 = vmatpush1.msra.mxu0 0.0
    %267 = vmatprep.subr.mxu0 0.0
    %268 = vmatpush1.msra.mxu0 0.0
    %269 = vmatprep.subr.mxu0 0.0
    %270 = vmatpush1.msra.mxu0 0.0
    %271 = vmatprep.subr.mxu0 0.0
    %272 = vmatpush1.msra.mxu0 0.0
    %273 = vmatprep.subr.mxu0 0.0
    %274 = vmatpush1.msra.mxu0 0.0
    %275 = vmatprep.subr.mxu0 0.0
    %276 = vmatpush1.msra.mxu0 0.0
    %277 = vmatprep.subr.mxu0 0.0
    %278 = vmatpush1.msra.mxu0 0.0
    %279 = vmatprep.subr.mxu0 0.0
    %280 = vmatpush1.msra.mxu0 0.0
    %281 = vmatprep.subr.mxu0 0.0
    %282 = vmatpush1.msra.mxu0 0.0
    %283 = vmatprep.subr.mxu0 0.0
    %284 = vmatpush1.msra.mxu0 0.0
    %285 = vmatprep.subr.mxu0 0.0
    %286 = vmatpush1.msra.mxu0 0.0
    %287 = vmatprep.mubr.f32.mxu0 0.0
    %288 = vmatmul.mubr.f32.gmra.mrb[0].mxu0 %v203
    %v289 = vpop.f32.mrb[0].mxu0
    %v290 = vadd.f32 0.0, %v289
    %v291 = vpop.f32.mrb[0].mxu0
    %292 = vmatprep.mubr.f32.mxu0 0.0
    %293 = vmatmul.mubr.f32.gmra.mrb[0].mxu0 %v204
    %v294 = vpop.f32.mrb[0].mxu0
    %v295 = vadd.f32 0.0, %v294
    %v296 = vpop.f32.mrb[0].mxu0
    %297 = vdwg.mxu0
    %v298 = vadd.f32 %v205, %v290
    %v299 = vadd.f32 %v206, %v295
    %300 = vst.msk [vmem:[#allocation2] sm:$0xff] %vm105, %v298
    %301 = vst.msk [vmem:[#allocation2 + $0x8] sm:$0xff] %vm105, %v299
    // Predicated region
    $region46: #{gpt_neo_mlp.1} parent=1 // pred_check
      %p302 = pneg %p85
    $region47: #{gpt_neo_mlp.1} parent=1 // pred_check_branch
      %304 = sbr.rel (%p302) target = $region49
    $region48: #{gpt_neo_mlp.1} parent=1 // pred_region
      %v305 = vld [vmem:[#allocation2] sm:$0xff]
      %v306 = vld [vmem:[#allocation2 + $0x8] sm:$0xff]
      %v307 = vld [vmem:[#allocation11] sm:$0x1]
      %v309 = vlaneseq
      %v310 = vshrl.u32 %v309, 7
      %v311 = vsub.s32 0, %v310
      %v312 = vrot.slane %v307, %v311
      %v314 = vadd.f32 %v305, %v312
      %v315 = vadd.f32 %v306, %v312
      %316 = vst.msk [vmem:[#allocation12] sm:$0xff] %vm105, %v314
      %317 = vst.msk [vmem:[#allocation12 + $0x8] sm:$0xff] %vm105, %v315
    $region49: #{gpt_neo_mlp.1} parent=1 // pred_fallthru
      _
    // Predicated region
    $region50: #{gpt_neo_mlp.1} parent=1 // pred_check
      _
    $region51: #{gpt_neo_mlp.1} parent=1 // pred_check_branch
      %319 = sbr.rel (0) target = $region53
    $region52: #{gpt_neo_mlp.1} parent=1 // pred_region
      %s321 = ssub.s32 256, 256
      %322 = vsyncadd [#allocation5], %s321
      %s323 = sshll.u32 [#allocation12], 4
      %s324 = int_to_ptr.vmem [resolvable:$true] %s323
      %329 = dma.vmem_to_hbm [thread:$0]  %s324, 256, %s5, [#allocation5], 128, 128, 8
    $region53: #{gpt_neo_mlp.1} parent=1 // pred_fallthru
      _
    // Predicated region
    $region54: #{gpt_neo_mlp.1} parent=1 // pred_check
      _
    $region55: #{gpt_neo_mlp.1} parent=1 // pred_check_branch
      %331 = sbr.rel (0) target = $region57
    $region56: #{gpt_neo_mlp.1} parent=1 // pred_region
      %332 = dma.done [#allocation5], 256
    $region57: #{gpt_neo_mlp.1} parent=1 // pred_fallthru
      _
    %333 = vsyncpa [#allocation4], 1
    %334 = vsyncpa [#allocation7], 1
    %335 = vsyncpa [#allocation10], 1
    %336 = vsyncpa [#allocation5], 1

</llo_original>
